<compile_context>
chip_gen: v7x
topology: tpu7x:2x2x1
jax: 0.10.0
libtpu: 0.0.40
codegen_flags: <defaults>
</compile_context>

<pallas_src>
import functools
import numpy as np
import jax
import jax.numpy as jnp
from jax import lax
from jax.experimental import pallas as pl
from jax.experimental.pallas import tpu as pltpu

NEG_INF = float("-inf")


# ----------------------------- helpers -----------------------------

def _lse2(x):
    """logsumexp over the two dims of a 2-D tile, keepdims (1,1), -inf safe."""
    m = jnp.max(jnp.max(x, axis=-1, keepdims=True), axis=-2, keepdims=True)
    safe = jnp.where(m == NEG_INF, jnp.zeros_like(m), m)
    s = jnp.sum(jnp.sum(jnp.exp(x - safe), axis=-1, keepdims=True), axis=-2, keepdims=True)
    return jnp.log(s) + safe


# ----------------------------- Pallas kernels -----------------------------

def _ss_head_kernel(hmm_ref, w_ref, b_ref, ss_ref):
    """model_ss head on the natural (B, cin, L) layout: per-batch channel matmul +
    softmax over channels + 0.001.  No wrapper-side transposes."""
    B = hmm_ref.shape[0]
    for bi in range(B):                                # B is tiny -> static unroll
        logits = jnp.dot(w_ref[...], hmm_ref[bi],
                         preferred_element_type=jnp.float32) + b_ref[...]
        mx = jnp.max(logits, axis=0, keepdims=True)
        e = jnp.exp(logits - mx)
        ss_ref[bi] = e / jnp.sum(e, axis=0, keepdims=True) + 0.001


def _viterbi_kernel(pi_ref, p_ref, tq_ref, ls_ref, ma_ref, pat_ref,
                    ptq_sc, bp_sc, nh_sc, *, nstate, s, size):
    """One batch element: full Viterbi forward DP (fori_loop over S-1 steps), packed int32
    backpointers, reversed-layout m_a emission, and in-kernel backtrace -> max_pattern."""
    C, S = nstate, s

    # ---- hoist the transition table: PTQ[cp, cn] = P[cn] + (T*Q)[cp, cn]  (loop-invariant) ----
    for cp in range(C):                                # C is tiny -> static unroll
        ptq_sc[cp] = p_ref[0] + tq_ref[cp]             # (C, S, S), -inf safe (add only)

    # ---- loop-invariant iotas, hoisted once (int32 end-to-end) ----
    tp_iota = lax.broadcasted_iota(jnp.int32, (S, S), 0)    # t_prev index, varies over sublanes
    pos_iota = lax.broadcasted_iota(jnp.int32, (C, S), 1)

    # ---- step 0: alpha0 = pi at position 0, -inf elsewhere, normalized ----
    a0 = jnp.where(pos_iota == 0,
                   jnp.broadcast_to(pi_ref[...], (C, S)),           # pi arrives as a (C,1) column
                   jnp.full((C, S), NEG_INF, jnp.float32))
    n0 = _lse2(a0)
    a0 = a0 - n0
    ma_ref[0, size] = a0                               # m_a already stored reversed
    nh_sc[0] = n0

    # ---- forward recursion: per-(cp, cn) 9-vreg slabs, packed int32 backpointers ----
    def step(i, carry):
        a_prev, n_prev = carry                         # (C, S) normalized alpha_{i-1}, (1,1) norm
        best_v = [None] * C
        best_bp = [None] * C
        for cp in range(C):                            # previous state, static unroll
            # alpha row cp as a (S,1) column broadcast over t_new (one relayout per cp)
            acp = jnp.broadcast_to(jnp.reshape(a_prev[cp:cp + 1, :], (S, 1)), (S, S))
            for cn in range(C):                        # new state, static unroll
                sc = ptq_sc[cp, cn] + acp              # (S_prev, S_new), consumed immediately
                vmax = jnp.max(sc, axis=0, keepdims=True)              # (1, S_new)
                hit = sc == vmax
                tfir = jnp.min(jnp.where(hit, tp_iota, S), axis=0, keepdims=True)
                bp = tfir + (cp << 16)                 # packed backpointer, cp-major
                if cp == 0:
                    best_v[cn], best_bp[cn] = vmax, bp
                else:
                    take = vmax > best_v[cn]           # strict: earlier cp wins ties (flat argmax)
                    best_v[cn] = jnp.where(take, vmax, best_v[cn])
                    best_bp[cn] = jnp.where(take, bp, best_bp[cn])
        v = jnp.concatenate(best_v, axis=0)            # (C, S)
        bpk = jnp.concatenate(best_bp, axis=0)         # (C, S) int32
        n_add = _lse2(v)
        n_new = n_prev + n_add
        a_new = v - n_add                              # == v + last_n - n_new
        ma_ref[0, size - i] = a_new                    # reversed position, no epilogue reshuffle
        nh_sc[i] = n_new
        bp_sc[i] = bpk
        return a_new, n_new

    lax.fori_loop(1, S, step, (a0, n0))

    # ---- add per-position norms: m_a[pos] = alpha_{size-pos} + norm_pos (one cheap pass) ----
    def add_norm(pos, carry):
        ma_ref[0, pos] = ma_ref[0, pos] + nh_sc[pos]
        return carry

    lax.fori_loop(0, S, add_norm, 0)

    # ---- in-kernel backtrace over the packed int32 backpointers (fori_loop, 1 extract/step) ----
    c_iota = lax.broadcasted_iota(jnp.int32, (C, S), 0)
    t_iota = pos_iota
    lane3 = lax.broadcasted_iota(jnp.int32, (1, 3), 1)

    def pack_row(c_v, l_v, t_v):                       # -> (1, 3) int32 row [c, l, t]
        return jnp.where(lane3 == 0, c_v, jnp.where(lane3 == 1, l_v, t_v))

    c0 = jnp.full((1, 1), C - 1, jnp.int32)
    t0 = ls_ref[0]                                     # (1, 1) int32
    l0 = jnp.zeros((1, 1), jnp.int32)
    pat_ref[0, size] = pack_row(c0, l0, t0)

    def bstep(j, carry):
        c_star, t_star, l_prev = carry
        bp_tile = bp_sc[size + 1 - j]                  # forward step whose backpointer we follow
        msk = (c_iota == c_star) & (t_iota == t_star)
        bp_val = jnp.sum(jnp.sum(jnp.where(msk, bp_tile, 0), axis=-1, keepdims=True),
                         axis=-2, keepdims=True)       # single masked-reduce extraction
        c_new = bp_val >> 16
        t_new = bp_val & 0xFFFF
        # the original's l-shift (mp[:, :-1, 1] = mp[:, 1:, 1]) is applied on the fly via l_prev
        pat_ref[0, size - j] = pack_row(c_new, l_prev, t_new)
        return c_new, t_new, t_new - t_star

    lax.fori_loop(1, S, bstep, (c0, t0, l0))


# ----------------------------- Pallas wrappers -----------------------------

def ss_head(hmm, w, b):
    B, cin, L = hmm.shape
    ssn = w.shape[0]
    return pl.pallas_call(
        _ss_head_kernel,
        out_shape=jax.ShapeDtypeStruct((B, ssn, L), jnp.float32),
        in_specs=[pl.BlockSpec(memory_space=pltpu.MemorySpace.VMEM)] * 3,
        out_specs=pl.BlockSpec(memory_space=pltpu.MemorySpace.VMEM),
    )(hmm.astype(jnp.float32), w.astype(jnp.float32), b.reshape(ssn, 1).astype(jnp.float32))


def viterbi_pallas(P4, Q4, pi, T, ls):
    """Returns (m_a, max_pattern). One kernel invocation per batch element."""
    B, C, S, _ = P4.shape
    size = S - 1
    kern = functools.partial(_viterbi_kernel, nstate=C, s=S, size=size)
    tq = (jnp.float32(T) * Q4).astype(jnp.float32)     # fold T into Q once (grid invariant)
    pi_col = pi.reshape(C, 1).astype(jnp.float32)      # already the layout the kernel wants
    ls_i = ls.astype(jnp.int32).reshape(B, 1, 1)
    m_a, pat = pl.pallas_call(
        kern,
        out_shape=(jax.ShapeDtypeStruct((B, S, C, S), jnp.float32),
                   jax.ShapeDtypeStruct((B, S, 1, 3), jnp.int32)),
        grid_spec=pltpu.PrefetchScalarGridSpec(
            num_scalar_prefetch=0,
            grid=(B,),
            in_specs=[
                pl.BlockSpec((C, 1), lambda b: (0, 0)),                      # pi column
                pl.BlockSpec((1, C, S, S), lambda b: (b, 0, 0, 0)),          # P (batch slice)
                pl.BlockSpec((C, C, S, S), lambda b: (0, 0, 0, 0)),          # T*Q (resident)
                pl.BlockSpec((1, 1, 1), lambda b: (b, 0, 0)),                # ls (batch slice)
            ],
            out_specs=[
                pl.BlockSpec((1, S, C, S), lambda b: (b, 0, 0, 0)),          # m_a, final layout
                pl.BlockSpec((1, S, 1, 3), lambda b: (b, 0, 0, 0)),          # max_pattern rows
            ],
            scratch_shapes=[
                pltpu.VMEM((C, C, S, S), jnp.float32),   # PTQ = P + T*Q (hoisted)
                pltpu.VMEM((S, C, S), jnp.int32),        # packed backpointers (cp<<16 | tp)
                pltpu.VMEM((S, 1, 1), jnp.float32),      # norm per step
            ],
        ),
        compiler_params=pltpu.CompilerParams(dimension_semantics=("parallel",)),
    )(pi_col, P4.astype(jnp.float32), tq, ls_i)
    return m_a, pat[:, :, 0, :]


# ----------------------------- Module port -----------------------------

class PatternMatchingInferenceJAX:
    """JAX/Pallas port of PatternMatchingInference (ssn == 3 path)."""

    def __init__(self, Q, pi, seq_hmm, w_ss, b_ss, size=68, name=""):
        self.name = f"Pattern Inferer {name}"
        self.size = size
        Q = jnp.asarray(Q, jnp.float32)[:, :, : size + 1, : size + 1]
        self.ssn = Q.shape[1] - 1
        self.Q = Q                                   # (C, C, S, S)
        self.pi = jnp.asarray(pi, jnp.float32)       # (C,)
        self.SEQ_HMM = jnp.asarray(seq_hmm, jnp.float32)
        self.w_ss = jnp.asarray(w_ss, jnp.float32)
        self.b_ss = jnp.asarray(b_ss, jnp.float32)

    # ---- glue: build HMM profile input (data-dependent compaction) ----
    def hmm_(self, x):
        B, _, L = x.shape
        rows, ls = [], []
        for i in range(B):
            x_ = x[i]
            valid = x_[0] == 0
            n_idx = jnp.sum(valid).astype(jnp.int32)
            order = jnp.argsort(jnp.logical_not(valid))   # stable: valid columns first, original order
            g = jnp.concatenate([x_[:20], self.SEQ_HMM], axis=0)[:, order]
            if L >= self.size:
                g = g[:, : self.size]
            else:
                g = jnp.pad(g, ((0, 0), (0, self.size - L)))
            g = jnp.where(jnp.arange(self.size)[None, :] < n_idx, g, 0.0)
            rows.append(g)
            ls.append(n_idx)
        return jnp.stack(rows, axis=0), jnp.stack(ls)

    # ---- glue: build P tensor (cumulative log-emissions) ----
    def P_(self, ss, ls):
        B = ss.shape[0]
        S = self.size + 1
        C_log = jnp.log(ss)                                              # (B, ssn, size)
        cs = jnp.concatenate([jnp.zeros((B, self.ssn, 1), jnp.float32),
                              jnp.cumsum(C_log, axis=-1)], axis=-1)      # (B, ssn, S)
        Pmain = cs[:, :, None, :] - cs[:, :, :, None]                    # sum_{i=j}^{k-1} C[i]
        upper = jnp.arange(S)[None, :] > jnp.arange(S)[:, None]          # k > j
        Pmain = jnp.where(upper[None, None], Pmain, NEG_INF)
        # last state: -inf except (l, l) for every l occurring in ls
        # (reproduces torch's P[:, -1, ls, ls] = 0 advanced-indexing semantics)
        hit = jnp.zeros((S,), bool).at[ls].set(True)
        diag = jnp.eye(S, dtype=bool) & hit[None, :]
        Plast = jnp.broadcast_to(jnp.where(diag[None, None], 0.0, NEG_INF), (B, 1, S, S))
        return jnp.concatenate([Pmain, Plast], axis=1).astype(jnp.float32)   # (B, C, S, S)

    def forward(self, x, T):
        hmm, ls = self.hmm_(x)
        ss = ss_head(hmm, self.w_ss, self.b_ss)                 # Pallas: channel matmul + softmax
        P4 = self.P_(ss, ls)
        m_a, max_pattern = viterbi_pallas(P4, self.Q, self.pi, T, ls)   # Pallas: DP + backtrace
        return max_pattern, dict(m_a=m_a, P=P4, ss=ss, ls=ls)


# ----------------------------- pure-JAX references for checking -----------------------------

def max_alpha_reference(P4, Q4, pi, T, size):
    B, C, S, _ = P4.shape

    def lse(x):
        m = jnp.max(x, axis=(-1, -2), keepdims=True)
        safe = jnp.where(m == NEG_INF, jnp.zeros_like(m), m)
        return jnp.log(jnp.sum(jnp.exp(x - safe), axis=(-1, -2), keepdims=True)) + safe

    a_ = jnp.full((B, C, S), NEG_INF, jnp.float32).at[:, :, 0].set(pi[None, :])
    n_ = lse(a_)
    a_ = a_ - n_
    alphas, norms = [a_], [n_]
    last_a, last_n = a_[:, :, None, :, None], n_
    P5, Q5 = P4[:, None], Q4[None]
    for _ in range(size):
        full = P5 + T * Q5 + last_a
        a_ = jnp.max(jnp.max(full, axis=-4), axis=-2)
        n_ = last_n + lse(a_)
        a_ = a_ + last_n - n_
        alphas.append(a_)
        norms.append(n_)
        last_a, last_n = a_[:, :, None, :, None], n_
    return jnp.stack(alphas[::-1], axis=1) + jnp.stack(norms, axis=1)


def argmax_alpha_reference(m_a, P4, Q4, T, ls):
    """Faithful port of the torch argmax_alpha (recomputes scores per backward step)."""
    B = m_a.shape[0]
    S = m_a.shape[-1]
    c_star = jnp.full((B,), Q4.shape[0] - 1, jnp.int32)
    t_star = ls.astype(jnp.int32)
    pats = [jnp.stack([c_star, jnp.zeros((B,), jnp.int32), t_star], axis=1)]
    for j in range(1, S):
        a = m_a[:, j]                                                    # (B, C, S)
        Pbc = P4[jnp.arange(B), c_star]                                  # (B, S, S)
        Pg = jnp.take_along_axis(Pbc, t_star[:, None, None], axis=2)[..., 0]        # (B, S)
        Qc = jnp.transpose(Q4[:, c_star], (1, 0, 2, 3))                  # (B, C, S, S)
        Qg = jnp.take_along_axis(Qc, t_star[:, None, None, None], axis=3)[..., 0]   # (B, C, S)
        score = Pg[:, None, :] + T * Qg + a
        idx = jnp.argmax(score.reshape(B, -1), axis=-1).astype(jnp.int32)
        c_new = idx // S
        t_new = idx % S
        l_new = t_new - t_star
        c_star, t_star = c_new, t_new
        pats.append(jnp.stack([c_star, l_new, t_star], axis=1))
    mp = jnp.stack(pats[::-1], axis=1)
    mp = mp.at[:, :-1, 1].set(mp[:, 1:, 1])
    mp = mp.at[:, -1, 1].set(0)
    return mp


# ----------------------------- main -----------------------------

if __name__ == "__main__":
    key = jax.random.PRNGKey(0)
    k1, k2, k3, k4, k5, k6 = jax.random.split(key, 6)

    size, ssn, batch = 16, 3, 2
    C, S = ssn + 1, size + 1
    nh, L = 10, 16
    cin = 20 + nh

    Q_full = 0.1 * jax.random.normal(k1, (C, C, size + 4, size + 4), jnp.float32)
    pi = jnp.log(jnp.full((C,), 1.0 / C, jnp.float32))
    seq_hmm = 0.5 * jax.random.normal(k2, (nh, L), jnp.float32)
    w_ss = 0.3 * jax.random.normal(k3, (ssn, cin), jnp.float32)
    b_ss = 0.1 * jax.random.normal(k4, (ssn,), jnp.float32)

    gap = (jax.random.uniform(k5, (batch, L)) > 0.45).astype(jnp.float32)   # channel 0: 0 == valid
    x_rest = jax.random.normal(k6, (batch, 19, L), jnp.float32)
    x = jnp.concatenate([gap[:, None, :], x_rest], axis=1)                  # (B, 20, L)
    T = 1.0

    model = PatternMatchingInferenceJAX(Q_full, pi, seq_hmm, w_ss, b_ss, size=size)
    max_pattern, aux = model.forward(x, T)
    jax.block_until_ready(max_pattern)

    # sanity: Pallas DP + backtrace vs pure-JAX references
    m_a_ref = max_alpha_reference(aux["P"], model.Q, model.pi, T, size)
    mp_ref = argmax_alpha_reference(aux["m_a"], aux["P"], model.Q, T, aux["ls"])

    assert max_pattern.shape == (batch, size + 1, 3)
    assert aux["m_a"].shape == (batch, S, C, S)
    assert bool(jnp.all(jnp.isfinite(aux["ss"])))
    assert np.allclose(np.asarray(aux["m_a"]), np.asarray(m_a_ref), rtol=2e-3, atol=2e-3)
    assert np.array_equal(np.asarray(max_pattern), np.asarray(mp_ref))
    print("KERNEL_OK")
</pallas_src>

<mosaic_0001>
module attributes {stable_mosaic.version = 11 : i64} {
  func.func @_ss_head_kernel(%arg0: memref<2x30x16xf32, #tpu.memory_space<vmem>>, %arg1: memref<3x30xf32, #tpu.memory_space<vmem>>, %arg2: memref<3x1xf32, #tpu.memory_space<vmem>>, %arg3: memref<2x3x16xf32, #tpu.memory_space<vmem>>) attributes {dimension_semantics = [], scalar_prefetch = 0 : i64, scratch_operands = 0 : i64, tpu.core_type = #tpu.core_type<tc>} {
    %c0 = arith.constant 0 : index
    %c0_0 = arith.constant 0 : index
    %0 = vector.load %arg1[%c0, %c0_0] : memref<3x30xf32, #tpu.memory_space<vmem>>, vector<3x30xf32>
    %c0_1 = arith.constant 0 : index
    %c0_2 = arith.constant 0 : index
    %c0_3 = arith.constant 0 : index
    %1 = vector.load %arg0[%c0_1, %c0_2, %c0_3] : memref<2x30x16xf32, #tpu.memory_space<vmem>>, vector<1x30x16xf32>
    %2 = vector.shape_cast %1 : vector<1x30x16xf32> to vector<30x16xf32>
    %cst = arith.constant dense<0.000000e+00> : vector<3x16xf32>
    %3 = tpu.matmul %0, %2, %cst {dimension_numbers = #tpu.dot_dimension_numbers<[1], [0], [0], [1], [0, 0, 1, 1], [], []>} : vector<3x30xf32>, vector<30x16xf32>, vector<3x16xf32> -> vector<3x16xf32>
    %c0_4 = arith.constant 0 : index
    %c0_5 = arith.constant 0 : index
    %4 = vector.load %arg2[%c0_4, %c0_5] : memref<3x1xf32, #tpu.memory_space<vmem>>, vector<3x1xf32>
    %5 = vector.broadcast %4 : vector<3x1xf32> to vector<3x16xf32>
    %6 = arith.addf %3, %5 : vector<3x16xf32>
    %cst_6 = arith.constant dense<0xFF800000> : vector<16xf32>
    %7 = vector.multi_reduction <maximumf>, %6, %cst_6 [0] : vector<3x16xf32> to vector<16xf32>
    %8 = vector.shape_cast %7 : vector<16xf32> to vector<1x16xf32>
    %9 = vector.broadcast %8 : vector<1x16xf32> to vector<3x16xf32>
    %10 = arith.subf %6, %9 : vector<3x16xf32>
    %11 = math.exp %10 : vector<3x16xf32>
    %cst_7 = arith.constant dense<0.000000e+00> : vector<16xf32>
    %12 = vector.multi_reduction <add>, %11, %cst_7 [0] : vector<3x16xf32> to vector<16xf32>
    %13 = vector.shape_cast %12 : vector<16xf32> to vector<1x16xf32>
    %14 = vector.broadcast %13 : vector<1x16xf32> to vector<3x16xf32>
    %15 = arith.divf %11, %14 : vector<3x16xf32>
    %cst_8 = arith.constant 1.000000e-03 : f32
    %16 = vector.broadcast %cst_8 : f32 to vector<3x16xf32>
    %17 = arith.addf %15, %16 : vector<3x16xf32>
    %c0_9 = arith.constant 0 : index
    %c0_10 = arith.constant 0 : index
    %c0_11 = arith.constant 0 : index
    %18 = vector.load %arg3[%c0_9, %c0_10, %c0_11] : memref<2x3x16xf32, #tpu.memory_space<vmem>>, vector<1x3x16xf32>
    %19 = vector.shape_cast %18 : vector<1x3x16xf32> to vector<3x16xf32>
    %20 = vector.shape_cast %17 : vector<3x16xf32> to vector<1x3x16xf32>
    tpu.vector_store %arg3[%c0_9, %c0_10, %c0_11], %20 {strides = array<i32>} : memref<2x3x16xf32, #tpu.memory_space<vmem>>, vector<1x3x16xf32>,
    %c0_12 = arith.constant 0 : index
    %c0_13 = arith.constant 0 : index
    %21 = vector.load %arg1[%c0_12, %c0_13] : memref<3x30xf32, #tpu.memory_space<vmem>>, vector<3x30xf32>
    %c1 = arith.constant 1 : index
    %c0_14 = arith.constant 0 : index
    %c0_15 = arith.constant 0 : index
    %22 = vector.load %arg0[%c1, %c0_14, %c0_15] : memref<2x30x16xf32, #tpu.memory_space<vmem>>, vector<1x30x16xf32>
    %23 = vector.shape_cast %22 : vector<1x30x16xf32> to vector<30x16xf32>
    %cst_16 = arith.constant dense<0.000000e+00> : vector<3x16xf32>
    %24 = tpu.matmul %21, %23, %cst_16 {dimension_numbers = #tpu.dot_dimension_numbers<[1], [0], [0], [1], [0, 0, 1, 1], [], []>} : vector<3x30xf32>, vector<30x16xf32>, vector<3x16xf32> -> vector<3x16xf32>
    %c0_17 = arith.constant 0 : index
    %c0_18 = arith.constant 0 : index
    %25 = vector.load %arg2[%c0_17, %c0_18] : memref<3x1xf32, #tpu.memory_space<vmem>>, vector<3x1xf32>
    %26 = vector.broadcast %25 : vector<3x1xf32> to vector<3x16xf32>
    %27 = arith.addf %24, %26 : vector<3x16xf32>
    %cst_19 = arith.constant dense<0xFF800000> : vector<16xf32>
    %28 = vector.multi_reduction <maximumf>, %27, %cst_19 [0] : vector<3x16xf32> to vector<16xf32>
    %29 = vector.shape_cast %28 : vector<16xf32> to vector<1x16xf32>
    %30 = vector.broadcast %29 : vector<1x16xf32> to vector<3x16xf32>
    %31 = arith.subf %27, %30 : vector<3x16xf32>
    %32 = math.exp %31 : vector<3x16xf32>
    %cst_20 = arith.constant dense<0.000000e+00> : vector<16xf32>
    %33 = vector.multi_reduction <add>, %32, %cst_20 [0] : vector<3x16xf32> to vector<16xf32>
    %34 = vector.shape_cast %33 : vector<16xf32> to vector<1x16xf32>
    %35 = vector.broadcast %34 : vector<1x16xf32> to vector<3x16xf32>
    %36 = arith.divf %32, %35 : vector<3x16xf32>
    %cst_21 = arith.constant 1.000000e-03 : f32
    %37 = vector.broadcast %cst_21 : f32 to vector<3x16xf32>
    %38 = arith.addf %36, %37 : vector<3x16xf32>
    %c1_22 = arith.constant 1 : index
    %c0_23 = arith.constant 0 : index
    %c0_24 = arith.constant 0 : index
    %39 = vector.load %arg3[%c1_22, %c0_23, %c0_24] : memref<2x3x16xf32, #tpu.memory_space<vmem>>, vector<1x3x16xf32>
    %40 = vector.shape_cast %39 : vector<1x3x16xf32> to vector<3x16xf32>
    %41 = vector.shape_cast %38 : vector<3x16xf32> to vector<1x3x16xf32>
    tpu.vector_store %arg3[%c1_22, %c0_23, %c0_24], %41 {strides = array<i32>} : memref<2x3x16xf32, #tpu.memory_space<vmem>>, vector<1x3x16xf32>,
    return
  }
}

</mosaic_0001>

<llo_original>
// kernel: tpu_custom_call.1
$region0: #{tpu_custom_call.1}
  #allocation0 [shape = 'u32[]', space=smem, size = 0x4, offset = 0x4, fixed_abs, tag = 'smem constant byte address 0x4 - core index']
  #allocation1 [shape = 'u32[144,128]{1,0:T(1,128)}', space=vmem, size = 0x12000, scoped, tag = 'internal scratch']
  %s0 = inlined_call_operand.vmem [shape: f32[2,30,16], index: 0, kind: input, shape index: {}]
  %s1 = inlined_call_operand.vmem [shape: f32[3,30], index: 1, kind: input, shape index: {}]
  %s2 = inlined_call_operand.vmem [shape: f32[3,1], index: 2, kind: input, shape index: {}]
  %s3 = inlined_call_operand.vmem [shape: f32[2,3,16], index: 3, kind: output, shape index: {}]
  %s4 = sld [smem:[#allocation0]]
  $region22: #{tpu_custom_call.1} parent=0
    _
  %s6 = ssub.s32 1, %s4
  %s7 = scalar_select 0, %s6, %s4
  // Predicated region
  $region2: #{tpu_custom_call.1} parent=0 // pred_check
    _
  $region3: #{tpu_custom_call.1} parent=0 // pred_check_branch
    %9 = sbr.rel (0) target = $region5
  $region4: #{tpu_custom_call.1} parent=0 // pred_region
    _
  $region5: #{tpu_custom_call.1} parent=0 // pred_fallthru
    _
  // Predicated region
  $region6: #{tpu_custom_call.1} parent=0 // pred_check
    _
  $region7: #{tpu_custom_call.1} parent=0 // pred_check_branch
    %11 = sbr.rel (0) target = $region9
  $region8: #{tpu_custom_call.1} parent=0 // pred_region
    _
  $region9: #{tpu_custom_call.1} parent=0 // pred_fallthru
    _
  // Predicated region
  $region10: #{tpu_custom_call.1} parent=0 // pred_check
    _
  $region11: #{tpu_custom_call.1} parent=0 // pred_check_branch
    %13 = sbr.rel (0) target = $region13
  $region12: #{tpu_custom_call.1} parent=0 // pred_region
    _
  $region13: #{tpu_custom_call.1} parent=0 // pred_fallthru
    _
  %v14 = vld [vmem:[%s1] sm:$0x7]
  %v15 = vld [vmem:[%s0] sm:$0xff]
  %v16 = vld [vmem:[%s0 + $0x8] sm:$0xff]
  %v17 = vld [vmem:[%s0 + $0x10] sm:$0xff]
  %v18 = vld [vmem:[%s0 + $0x18] sm:$0x3f]
  %v19 = vld [vmem:[%s2] sm:$0x7]
  %21 = vset.pattern.permute.xlu0 0
  %22 = vperm.xlu0 %21, %v19
  %v23 = vpop.permute.xlu0 %22
  %vm25 = vcmask 244736
  %v27 = vsel %vm25, %v14, 0
  %vm29 = vcmask 1045504
  %v31 = vsel %vm29, %v18, 0
  %33 = vmatprep.subr.mxu0 0.0
  %34 = vmatpush1.msra.mxu0 %v15
  %35 = vmatprep.subr.mxu0 0.0
  %36 = vmatpush1.msra.mxu0 %v16
  %37 = vmatprep.subr.mxu0 0.0
  %38 = vmatpush1.msra.mxu0 %v17
  %39 = vmatprep.subr.mxu0 0.0
  %40 = vmatpush1.msra.mxu0 %v31
  %41 = vmatprep.subr.mxu0 0.0
  %42 = vmatpush1.msra.mxu0 0.0
  %43 = vmatprep.subr.mxu0 0.0
  %44 = vmatpush1.msra.mxu0 0.0
  %45 = vmatprep.subr.mxu0 0.0
  %46 = vmatpush1.msra.mxu0 0.0
  %47 = vmatprep.subr.mxu0 0.0
  %48 = vmatpush1.msra.mxu0 0.0
  %49 = vmatprep.subr.mxu0 0.0
  %50 = vmatpush1.msra.mxu0 0.0
  %51 = vmatprep.subr.mxu0 0.0
  %52 = vmatpush1.msra.mxu0 0.0
  %53 = vmatprep.subr.mxu0 0.0
  %54 = vmatpush1.msra.mxu0 0.0
  %55 = vmatprep.subr.mxu0 0.0
  %56 = vmatpush1.msra.mxu0 0.0
  %57 = vmatprep.subr.mxu0 0.0
  %58 = vmatpush1.msra.mxu0 0.0
  %59 = vmatprep.subr.mxu0 0.0
  %60 = vmatpush1.msra.mxu0 0.0
  %61 = vmatprep.subr.mxu0 0.0
  %62 = vmatpush1.msra.mxu0 0.0
  %63 = vmatprep.subr.mxu0 0.0
  %64 = vmatpush1.msra.mxu0 0.0
  %65 = vmatprep.subr.mxu0 0.0
  %66 = vmatpush1.msra.mxu0 0.0
  %67 = vmatprep.subr.mxu0 0.0
  %68 = vmatpush1.msra.mxu0 0.0
  %69 = vmatprep.subr.mxu0 0.0
  %70 = vmatpush1.msra.mxu0 0.0
  %71 = vmatprep.subr.mxu0 0.0
  %72 = vmatpush1.msra.mxu0 0.0
  %73 = vmatprep.subr.mxu0 0.0
  %74 = vmatpush1.msra.mxu0 0.0
  %75 = vmatprep.subr.mxu0 0.0
  %76 = vmatpush1.msra.mxu0 0.0
  %77 = vmatprep.subr.mxu0 0.0
  %78 = vmatpush1.msra.mxu0 0.0
  %79 = vmatprep.subr.mxu0 0.0
  %80 = vmatpush1.msra.mxu0 0.0
  %81 = vmatprep.subr.mxu0 0.0
  %82 = vmatpush1.msra.mxu0 0.0
  %83 = vmatprep.subr.mxu0 0.0
  %84 = vmatpush1.msra.mxu0 0.0
  %85 = vmatprep.subr.mxu0 0.0
  %86 = vmatpush1.msra.mxu0 0.0
  %87 = vmatprep.subr.mxu0 0.0
  %88 = vmatpush1.msra.mxu0 0.0
  %89 = vmatprep.subr.mxu0 0.0
  %90 = vmatpush1.msra.mxu0 0.0
  %91 = vmatprep.subr.mxu0 0.0
  %92 = vmatpush1.msra.mxu0 0.0
  %93 = vmatprep.subr.mxu0 0.0
  %94 = vmatpush1.msra.mxu0 0.0
  %95 = vmatprep.subr.mxu0 0.0
  %96 = vmatpush1.msra.mxu0 0.0
  %97 = vmatprep.mubr.f32.mxu0 0.0
  %98 = vmatmul.mubr.f32.gmra.mrb[0].mxu0 %v27
  %v99 = vpop.f32.mrb[0].mxu0
  %v100 = vadd.f32 %v23, %v99
  %v101 = vpop.f32.mrb[0].mxu0
  %102 = vdwg.mxu0
  %vm103 = vcmask 124928
  %v104 = vsel %vm103, %v100, -inf
  %v105 = vrot.slane %v104, 4
  %v106 = vmax.f32 %v104, %v105
  %v107 = vrot.slane %v106, 2
  %v108 = vmax.f32 %v106, %v107
  %v109 = vrot.slane %v108, 1
  %v110 = vmax.f32 %v108, %v109
  %v111 = vsub.f32 %v100, %v110
  %v112 = vmul.f32 %v111, 1.442695
  %v113 = vpow.pop %v112
  %v114 = vsel %vm103, %v113, 0.0
  %v115 = vrot.slane %v114, 4
  %v116 = vadd.f32 %v114, %v115
  %v117 = vrot.slane %v116, 2
  %v118 = vadd.f32 %v116, %v117
  %v119 = vrot.slane %v118, 1
  %v120 = vadd.f32 %v118, %v119
  %v121 = vrcp.pop %v120
  %v122 = vmul.f32 %v113, %v121
  %v123 = vadd.f32 %v122, 0.001
  %124 = vst.msk [vmem:[%s3] sm:$0x7] %vm103, %v123
  %v125 = vld [vmem:[%s1] sm:$0x7]
  %s126 = scalar_lea.vmem %s0, 32
  %v127 = vld [vmem:[%s126] sm:$0xff]
  %v128 = vld [vmem:[%s126 + $0x8] sm:$0xff]
  %v129 = vld [vmem:[%s126 + $0x10] sm:$0xff]
  %v130 = vld [vmem:[%s126 + $0x18] sm:$0x3f]
  %v131 = vld [vmem:[%s2] sm:$0x7]
  %133 = vset.pattern.permute.xlu0 0
  %134 = vperm.xlu0 %133, %v131
  %v135 = vpop.permute.xlu0 %134
  %v138 = vsel %vm25, %v125, 0
  %v141 = vsel %vm29, %v130, 0
  %143 = vmatprep.subr.mxu0 0.0
  %144 = vmatpush1.msra.mxu0 %v127
  %145 = vmatprep.subr.mxu0 0.0
  %146 = vmatpush1.msra.mxu0 %v128
  %147 = vmatprep.subr.mxu0 0.0
  %148 = vmatpush1.msra.mxu0 %v129
  %149 = vmatprep.subr.mxu0 0.0
  %150 = vmatpush1.msra.mxu0 %v141
  %151 = vmatprep.subr.mxu0 0.0
  %152 = vmatpush1.msra.mxu0 0.0
  %153 = vmatprep.subr.mxu0 0.0
  %154 = vmatpush1.msra.mxu0 0.0
  %155 = vmatprep.subr.mxu0 0.0
  %156 = vmatpush1.msra.mxu0 0.0
  %157 = vmatprep.subr.mxu0 0.0
  %158 = vmatpush1.msra.mxu0 0.0
  %159 = vmatprep.subr.mxu0 0.0
  %160 = vmatpush1.msra.mxu0 0.0
  %161 = vmatprep.subr.mxu0 0.0
  %162 = vmatpush1.msra.mxu0 0.0
  %163 = vmatprep.subr.mxu0 0.0
  %164 = vmatpush1.msra.mxu0 0.0
  %165 = vmatprep.subr.mxu0 0.0
  %166 = vmatpush1.msra.mxu0 0.0
  %167 = vmatprep.subr.mxu0 0.0
  %168 = vmatpush1.msra.mxu0 0.0
  %169 = vmatprep.subr.mxu0 0.0
  %170 = vmatpush1.msra.mxu0 0.0
  %171 = vmatprep.subr.mxu0 0.0
  %172 = vmatpush1.msra.mxu0 0.0
  %173 = vmatprep.subr.mxu0 0.0
  %174 = vmatpush1.msra.mxu0 0.0
  %175 = vmatprep.subr.mxu0 0.0
  %176 = vmatpush1.msra.mxu0 0.0
  %177 = vmatprep.subr.mxu0 0.0
  %178 = vmatpush1.msra.mxu0 0.0
  %179 = vmatprep.subr.mxu0 0.0
  %180 = vmatpush1.msra.mxu0 0.0
  %181 = vmatprep.subr.mxu0 0.0
  %182 = vmatpush1.msra.mxu0 0.0
  %183 = vmatprep.subr.mxu0 0.0
  %184 = vmatpush1.msra.mxu0 0.0
  %185 = vmatprep.subr.mxu0 0.0
  %186 = vmatpush1.msra.mxu0 0.0
  %187 = vmatprep.subr.mxu0 0.0
  %188 = vmatpush1.msra.mxu0 0.0
  %189 = vmatprep.subr.mxu0 0.0
  %190 = vmatpush1.msra.mxu0 0.0
  %191 = vmatprep.subr.mxu0 0.0
  %192 = vmatpush1.msra.mxu0 0.0
  %193 = vmatprep.subr.mxu0 0.0
  %194 = vmatpush1.msra.mxu0 0.0
  %195 = vmatprep.subr.mxu0 0.0
  %196 = vmatpush1.msra.mxu0 0.0
  %197 = vmatprep.subr.mxu0 0.0
  %198 = vmatpush1.msra.mxu0 0.0
  %199 = vmatprep.subr.mxu0 0.0
  %200 = vmatpush1.msra.mxu0 0.0
  %201 = vmatprep.subr.mxu0 0.0
  %202 = vmatpush1.msra.mxu0 0.0
  %203 = vmatprep.subr.mxu0 0.0
  %204 = vmatpush1.msra.mxu0 0.0
  %205 = vmatprep.subr.mxu0 0.0
  %206 = vmatpush1.msra.mxu0 0.0
  %207 = vmatprep.mubr.f32.mxu0 0.0
  %208 = vmatmul.mubr.f32.gmra.mrb[0].mxu0 %v138
  %v209 = vpop.f32.mrb[0].mxu0
  %v210 = vadd.f32 %v135, %v209
  %v211 = vpop.f32.mrb[0].mxu0
  %212 = vdwg.mxu0
  %v213 = vsel %vm103, %v210, -inf
  %v214 = vrot.slane %v213, 4
  %v215 = vmax.f32 %v213, %v214
  %v216 = vrot.slane %v215, 2
  %v217 = vmax.f32 %v215, %v216
  %v218 = vrot.slane %v217, 1
  %v219 = vmax.f32 %v217, %v218
  %v220 = vsub.f32 %v210, %v219
  %v221 = vmul.f32 %v220, 1.442695
  %v222 = vpow.pop %v221
  %v223 = vsel %vm103, %v222, 0.0
  %v224 = vrot.slane %v223, 4
  %v225 = vadd.f32 %v223, %v224
  %v226 = vrot.slane %v225, 2
  %v227 = vadd.f32 %v225, %v226
  %v228 = vrot.slane %v227, 1
  %v229 = vadd.f32 %v227, %v228
  %v230 = vrcp.pop %v229
  %v231 = vmul.f32 %v222, %v230
  %v232 = vadd.f32 %v231, 0.001
  %s233 = scalar_lea.vmem %s3, 4
  %234 = vst.msk [vmem:[%s233] sm:$0x7] %vm103, %v232
  // Predicated region
  $region14: #{tpu_custom_call.1} parent=0 // pred_check
    _
  $region15: #{tpu_custom_call.1} parent=0 // pred_check_branch
    %236 = sbr.rel (0) target = $region17
  $region16: #{tpu_custom_call.1} parent=0 // pred_region
    _
  $region17: #{tpu_custom_call.1} parent=0 // pred_fallthru
    _
  // Predicated region
  $region18: #{tpu_custom_call.1} parent=0 // pred_check
    _
  $region19: #{tpu_custom_call.1} parent=0 // pred_check_branch
    %238 = sbr.rel (0) target = $region21
  $region20: #{tpu_custom_call.1} parent=0 // pred_region
    _
  $region21: #{tpu_custom_call.1} parent=0 // pred_fallthru
    _

</llo_original>
